<compile_context>
chip_gen: v7x
topology: tpu7x:2x2x1
jax: 0.10.0
libtpu: 0.0.40
codegen_flags: <defaults>
</compile_context>

<pallas_src>
import functools

import jax
import jax.numpy as jnp
from jax import lax
from jax.experimental import pallas as pl
from jax.experimental.pallas import tpu as pltpu

TEMPERATURE = 0.05
COS_EPS = 1e-8          # matches torch F.cosine_similarity eps default
NEG = -1e30             # finite "minus infinity" for the diagonal mask
OUT_LANES = 128         # lane-dense output width


def ntxent_kernel(xq_ref, xk_ref, out_ref, m_sc, l_sc, tgt_sc,
                  *, inv_temp, eps, matmul_dtype):
    i = pl.program_id(0)          # query row-block index
    j = pl.program_id(1)          # key   col-block index (reduction axis)
    nj = pl.num_programs(1)

    q = xq_ref[...].astype(jnp.float32)        # (T, D)
    k = xk_ref[...].astype(jnp.float32)        # (T, D)
    T = q.shape[0]

    # Normalize rows; fold 1/temperature into the query operand only.
    q_inv = lax.rsqrt(jnp.maximum(jnp.sum(q * q, axis=-1, keepdims=True), eps * eps))
    k_inv = lax.rsqrt(jnp.maximum(jnp.sum(k * k, axis=-1, keepdims=True), eps * eps))
    qn = q * (q_inv * inv_temp)                # (T, D) scaled, normalized queries
    kn = k * k_inv                             # (T, D) normalized keys

    if matmul_dtype is not None and matmul_dtype != jnp.float32:
        qn = qn.astype(matmul_dtype)
        kn = kn.astype(matmul_dtype)

    # Logits block: contract feature dim of both operands (no explicit x.T).
    s = lax.dot_general(qn, kn,
                        dimension_numbers=(((1,), (1,)), ((), ())),
                        preferred_element_type=jnp.float32)     # (T, T)

    row_l = lax.broadcasted_iota(jnp.int32, (T, T), 0)
    col_l = lax.broadcasted_iota(jnp.int32, (T, T), 1)

    # Init online-LSE accumulators at the first key block.
    @pl.when(j == 0)
    def _init():
        m_sc[...] = jnp.full_like(m_sc, NEG)
        l_sc[...] = jnp.zeros_like(l_sc)

    # Target logit: target of global row r is r ^ 1 (adjacent-pair swap), which
    # lives in the diagonal tile only (blocks are even-sized and even-aligned),
    # at local column (local_row ^ 1).  Extract it once per row block.
    @pl.when(j == i)
    def _target():
        pair = col_l == jnp.bitwise_xor(row_l, 1)
        tgt_sc[...] = jnp.sum(jnp.where(pair, s, 0.0), axis=-1, keepdims=True)

    # Mask the global diagonal (self-similarity) with a finite large negative.
    # global_row == global_col  <=>  row_l - col_l == (j - i) * T
    diag = (row_l - col_l) == (j - i) * T
    s_masked = jnp.where(diag, NEG, s)

    # Online logsumexp update over key blocks.
    m_prev = m_sc[...]
    m_new = jnp.maximum(m_prev, jnp.max(s_masked, axis=-1, keepdims=True))
    alpha = jnp.exp(m_prev - m_new)
    l_sc[...] = alpha * l_sc[...] + jnp.sum(jnp.exp(s_masked - m_new),
                                            axis=-1, keepdims=True)
    m_sc[...] = m_new

    # Finalize: per-row loss = logsumexp - target_logit, written lane-dense.
    @pl.when(j == nj - 1)
    def _finalize():
        loss_rows = (m_sc[...] + jnp.log(l_sc[...])) - tgt_sc[...]    # (T, 1)
        out_ref[...] = jnp.broadcast_to(loss_rows, out_ref.shape)


def _pick_block(B):
    for t in (512, 256, 128):
        if B % t == 0:
            return t
    return B   # small batch: single block covering the full array


def ntxcent_loss(x, *, temperature=TEMPERATURE, eps=COS_EPS,
                 block_size=None, matmul_dtype=None):
    """NT-Xent loss of x (B, D).  matmul_dtype=jnp.bfloat16 enables the fast
    bf16-in / f32-accumulate MXU path on v6e/v7x (slightly looser numerics)."""
    B, D = x.shape
    T = block_size if block_size is not None else _pick_block(B)
    assert B % T == 0 and T % 2 == 0, "batch must tile into even-sized blocks"
    nb = B // T

    kernel = functools.partial(ntxent_kernel,
                               inv_temp=1.0 / temperature,
                               eps=eps,
                               matmul_dtype=matmul_dtype)

    out = pl.pallas_call(
        kernel,
        out_shape=jax.ShapeDtypeStruct((B, OUT_LANES), jnp.float32),
        grid_spec=pltpu.PrefetchScalarGridSpec(
            num_scalar_prefetch=0,
            grid=(nb, nb),
            in_specs=[pl.BlockSpec((T, D), lambda i, j: (i, 0)),   # query rows
                      pl.BlockSpec((T, D), lambda i, j: (j, 0))],  # key rows
            out_specs=pl.BlockSpec((T, OUT_LANES), lambda i, j: (i, 0)),
            scratch_shapes=[pltpu.VMEM((T, 1), jnp.float32),   # m (running max)
                            pltpu.VMEM((T, 1), jnp.float32),   # l (running sum)
                            pltpu.VMEM((T, 1), jnp.float32)],  # target logit
        ),
        compiler_params=pltpu.CompilerParams(
            dimension_semantics=("parallel", "arbitrary")),
    )(x, x)

    # Every lane of a row holds the same per-row loss; finish the mean here.
    return jnp.mean(out[:, 0])


def ntxcent_ref(x, temperature=TEMPERATURE, eps=COS_EPS):
    # pure-JAX reference for sanity checking
    x = x.astype(jnp.float32)
    n = jnp.sqrt(jnp.sum(x * x, axis=-1, keepdims=True))
    sim = (x @ x.T) / jnp.maximum(n * n.T, eps)
    B = x.shape[0]
    sim = jnp.where(jnp.eye(B, dtype=bool), -jnp.inf, sim) / temperature
    tgt = jnp.arange(B) + 1 - 2 * (jnp.arange(B) % 2)
    lse = jax.scipy.special.logsumexp(sim, axis=-1)
    return jnp.mean(lse - sim[jnp.arange(B), tgt])


if __name__ == "__main__":
    key = jax.random.PRNGKey(0)

    # Small shape consistent with the module (even batch of paired rows).
    B, D = 8, 32
    x = jax.random.normal(key, (B, D), dtype=jnp.float32)
    loss = jax.block_until_ready(ntxcent_loss(x))
    ref = jax.block_until_ready(ntxcent_ref(x))
    assert jnp.allclose(loss, ref, atol=1e-4, rtol=1e-4), (loss, ref)

    # Exercise the tiled (multi-block grid) path as well.
    x2 = jax.random.normal(jax.random.PRNGKey(1), (384, 128), dtype=jnp.float32)
    loss2 = jax.block_until_ready(ntxcent_loss(x2, block_size=128))
    ref2 = jax.block_until_ready(ntxcent_ref(x2))
    assert jnp.allclose(loss2, ref2, atol=1e-3, rtol=1e-3), (loss2, ref2)

    print("KERNEL_OK")
</pallas_src>

<mosaic_0001>
module attributes {stable_mosaic.version = 11 : i64} {
  func.func @ntxent_kernel(%arg0: i32, %arg1: i32, %arg2: memref<8x32xf32, #tpu.memory_space<vmem>>, %arg3: memref<8x32xf32, #tpu.memory_space<vmem>>, %arg4: memref<8x128xf32, #tpu.memory_space<vmem>>, %arg5: memref<8x1xf32, #tpu.memory_space<vmem>>, %arg6: memref<8x1xf32, #tpu.memory_space<vmem>>, %arg7: memref<8x1xf32, #tpu.memory_space<vmem>>) attributes {dimension_semantics = [#tpu.dimension_semantics<parallel>, #tpu.dimension_semantics<arbitrary>], iteration_bounds = array<i64: 1, 1>, scalar_prefetch = 0 : i64, scratch_operands = 3 : i64, tpu.core_type = #tpu.core_type<tc>, window_params = [{transform_indices = @transform_0, window_bounds = array<i64: 8, 32>}, {transform_indices = @transform_1, window_bounds = array<i64: 8, 32>}, {transform_indices = @transform_2, window_bounds = array<i64: 8, 128>}]} {
    %c0 = arith.constant 0 : index
    %c0_0 = arith.constant 0 : index
    %0 = vector.load %arg2[%c0, %c0_0] : memref<8x32xf32, #tpu.memory_space<vmem>>, vector<8x32xf32>
    %c0_1 = arith.constant 0 : index
    %c0_2 = arith.constant 0 : index
    %1 = vector.load %arg3[%c0_1, %c0_2] : memref<8x32xf32, #tpu.memory_space<vmem>>, vector<8x32xf32>
    %2 = arith.mulf %0, %0 : vector<8x32xf32>
    %cst = arith.constant dense<0.000000e+00> : vector<8xf32>
    %3 = vector.multi_reduction <add>, %2, %cst [1] : vector<8x32xf32> to vector<8xf32>
    %4 = vector.shape_cast %3 : vector<8xf32> to vector<8x1xf32>
    %cst_3 = arith.constant 1.000000e-16 : f32
    %5 = vector.broadcast %cst_3 : f32 to vector<8x1xf32>
    %6 = arith.maximumf %4, %5 : vector<8x1xf32>
    %7 = math.rsqrt %6 : vector<8x1xf32>
    %8 = arith.mulf %1, %1 : vector<8x32xf32>
    %cst_4 = arith.constant dense<0.000000e+00> : vector<8xf32>
    %9 = vector.multi_reduction <add>, %8, %cst_4 [1] : vector<8x32xf32> to vector<8xf32>
    %10 = vector.shape_cast %9 : vector<8xf32> to vector<8x1xf32>
    %cst_5 = arith.constant 1.000000e-16 : f32
    %11 = vector.broadcast %cst_5 : f32 to vector<8x1xf32>
    %12 = arith.maximumf %10, %11 : vector<8x1xf32>
    %13 = math.rsqrt %12 : vector<8x1xf32>
    %cst_6 = arith.constant 2.000000e+01 : f32
    %14 = vector.broadcast %cst_6 : f32 to vector<8x1xf32>
    %15 = arith.mulf %7, %14 : vector<8x1xf32>
    %16 = vector.broadcast %15 : vector<8x1xf32> to vector<8x32xf32>
    %17 = arith.mulf %0, %16 : vector<8x32xf32>
    %18 = vector.broadcast %13 : vector<8x1xf32> to vector<8x32xf32>
    %19 = arith.mulf %1, %18 : vector<8x32xf32>
    %cst_7 = arith.constant dense<0.000000e+00> : vector<8x8xf32>
    %20 = tpu.matmul %17, %19, %cst_7 {dimension_numbers = #tpu.dot_dimension_numbers<[1], [1], [0], [0], [0, 0, 1, 0], [], []>} : vector<8x32xf32>, vector<8x32xf32>, vector<8x8xf32> -> vector<8x8xf32>
    %21 = tpu.iota {dimensions = array<i32: 0>} : vector<8x8xi32>
    %22 = tpu.iota {dimensions = array<i32: 1>} : vector<8x8xi32>
    %c0_i32 = arith.constant 0 : i32
    %23 = arith.cmpi eq, %arg1, %c0_i32 : i32
    %24 = arith.extui %23 : i1 to i32
    %c0_i32_8 = arith.constant 0 : i32
    %25 = arith.cmpi ne, %24, %c0_i32_8 : i32
    scf.if %25 {
      %cst_23 = arith.constant -1.000000e+30 : f32
      %55 = vector.broadcast %cst_23 : f32 to vector<8x1xf32>
      %c0_24 = arith.constant 0 : index
      %c0_25 = arith.constant 0 : index
      %56 = vector.load %arg5[%c0_24, %c0_25] : memref<8x1xf32, #tpu.memory_space<vmem>>, vector<8x1xf32>
      tpu.vector_store %arg5[%c0_24, %c0_25], %55 {strides = array<i32>} : memref<8x1xf32, #tpu.memory_space<vmem>>, vector<8x1xf32>,
      %cst_26 = arith.constant 0.000000e+00 : f32
      %57 = vector.broadcast %cst_26 : f32 to vector<8x1xf32>
      %c0_27 = arith.constant 0 : index
      %c0_28 = arith.constant 0 : index
      %58 = vector.load %arg6[%c0_27, %c0_28] : memref<8x1xf32, #tpu.memory_space<vmem>>, vector<8x1xf32>
      tpu.vector_store %arg6[%c0_27, %c0_28], %57 {strides = array<i32>} : memref<8x1xf32, #tpu.memory_space<vmem>>, vector<8x1xf32>,
    } else {
    }
    %26 = arith.cmpi eq, %arg1, %arg0 : i32
    %27 = arith.extui %26 : i1 to i32
    %c0_i32_9 = arith.constant 0 : i32
    %28 = arith.cmpi ne, %27, %c0_i32_9 : i32
    scf.if %28 {
      %c1_i32 = arith.constant 1 : i32
      %55 = vector.broadcast %c1_i32 : i32 to vector<8x8xi32>
      %56 = arith.xori %21, %55 : vector<8x8xi32>
      %57 = arith.cmpi eq, %22, %56 : vector<8x8xi32>
      %cst_23 = arith.constant 0.000000e+00 : f32
      %58 = vector.broadcast %cst_23 : f32 to vector<8x8xf32>
      %59 = arith.select %57, %20, %58 : vector<8x8xi1>, vector<8x8xf32>
      %cst_24 = arith.constant dense<0.000000e+00> : vector<8xf32>
      %60 = vector.multi_reduction <add>, %59, %cst_24 [1] : vector<8x8xf32> to vector<8xf32>
      %61 = vector.shape_cast %60 : vector<8xf32> to vector<8x1xf32>
      %c0_25 = arith.constant 0 : index
      %c0_26 = arith.constant 0 : index
      %62 = vector.load %arg7[%c0_25, %c0_26] : memref<8x1xf32, #tpu.memory_space<vmem>>, vector<8x1xf32>
      tpu.vector_store %arg7[%c0_25, %c0_26], %61 {strides = array<i32>} : memref<8x1xf32, #tpu.memory_space<vmem>>, vector<8x1xf32>,
    } else {
    }
    %29 = arith.subi %21, %22 : vector<8x8xi32>
    %30 = arith.subi %arg1, %arg0 : i32
    %c8_i32 = arith.constant 8 : i32
    %31 = arith.muli %30, %c8_i32 : i32
    %32 = vector.broadcast %31 : i32 to vector<8x8xi32>
    %33 = arith.cmpi eq, %29, %32 : vector<8x8xi32>
    %cst_10 = arith.constant -1.000000e+30 : f32
    %34 = vector.broadcast %cst_10 : f32 to vector<8x8xf32>
    %35 = arith.select %33, %34, %20 : vector<8x8xi1>, vector<8x8xf32>
    %c0_11 = arith.constant 0 : index
    %c0_12 = arith.constant 0 : index
    %36 = vector.load %arg5[%c0_11, %c0_12] : memref<8x1xf32, #tpu.memory_space<vmem>>, vector<8x1xf32>
    %cst_13 = arith.constant dense<0xFF800000> : vector<8xf32>
    %37 = vector.multi_reduction <maximumf>, %35, %cst_13 [1] : vector<8x8xf32> to vector<8xf32>
    %38 = vector.shape_cast %37 : vector<8xf32> to vector<8x1xf32>
    %39 = arith.maximumf %36, %38 : vector<8x1xf32>
    %40 = arith.subf %36, %39 : vector<8x1xf32>
    %41 = math.exp %40 : vector<8x1xf32>
    %c0_14 = arith.constant 0 : index
    %c0_15 = arith.constant 0 : index
    %42 = vector.load %arg6[%c0_14, %c0_15] : memref<8x1xf32, #tpu.memory_space<vmem>>, vector<8x1xf32>
    %43 = arith.mulf %41, %42 : vector<8x1xf32>
    %44 = vector.broadcast %39 : vector<8x1xf32> to vector<8x8xf32>
    %45 = arith.subf %35, %44 : vector<8x8xf32>
    %46 = math.exp %45 : vector<8x8xf32>
    %cst_16 = arith.constant dense<0.000000e+00> : vector<8xf32>
    %47 = vector.multi_reduction <add>, %46, %cst_16 [1] : vector<8x8xf32> to vector<8xf32>
    %48 = vector.shape_cast %47 : vector<8xf32> to vector<8x1xf32>
    %49 = arith.addf %43, %48 : vector<8x1xf32>
    %c0_17 = arith.constant 0 : index
    %c0_18 = arith.constant 0 : index
    %50 = vector.load %arg6[%c0_17, %c0_18] : memref<8x1xf32, #tpu.memory_space<vmem>>, vector<8x1xf32>
    tpu.vector_store %arg6[%c0_17, %c0_18], %49 {strides = array<i32>} : memref<8x1xf32, #tpu.memory_space<vmem>>, vector<8x1xf32>,
    %c0_19 = arith.constant 0 : index
    %c0_20 = arith.constant 0 : index
    %51 = vector.load %arg5[%c0_19, %c0_20] : memref<8x1xf32, #tpu.memory_space<vmem>>, vector<8x1xf32>
    tpu.vector_store %arg5[%c0_19, %c0_20], %39 {strides = array<i32>} : memref<8x1xf32, #tpu.memory_space<vmem>>, vector<8x1xf32>,
    %c0_i32_21 = arith.constant 0 : i32
    %52 = arith.cmpi eq, %arg1, %c0_i32_21 : i32
    %53 = arith.extui %52 : i1 to i32
    %c0_i32_22 = arith.constant 0 : i32
    %54 = arith.cmpi ne, %53, %c0_i32_22 : i32
    scf.if %54 {
      %c0_23 = arith.constant 0 : index
      %c0_24 = arith.constant 0 : index
      %55 = vector.load %arg5[%c0_23, %c0_24] : memref<8x1xf32, #tpu.memory_space<vmem>>, vector<8x1xf32>
      %c0_25 = arith.constant 0 : index
      %c0_26 = arith.constant 0 : index
      %56 = vector.load %arg6[%c0_25, %c0_26] : memref<8x1xf32, #tpu.memory_space<vmem>>, vector<8x1xf32>
      %57 = math.log %56 : vector<8x1xf32>
      %58 = arith.addf %55, %57 : vector<8x1xf32>
      %c0_27 = arith.constant 0 : index
      %c0_28 = arith.constant 0 : index
      %59 = vector.load %arg7[%c0_27, %c0_28] : memref<8x1xf32, #tpu.memory_space<vmem>>, vector<8x1xf32>
      %60 = arith.subf %58, %59 : vector<8x1xf32>
      %61 = vector.shape_cast %60 : vector<8x1xf32> to vector<8x1xf32>
      %62 = vector.broadcast %61 : vector<8x1xf32> to vector<8x128xf32>
      %c0_29 = arith.constant 0 : index
      %c0_30 = arith.constant 0 : index
      %63 = vector.load %arg4[%c0_29, %c0_30] : memref<8x128xf32, #tpu.memory_space<vmem>>, vector<8x128xf32>
      tpu.vector_store %arg4[%c0_29, %c0_30], %62 {strides = array<i32>} : memref<8x128xf32, #tpu.memory_space<vmem>>, vector<8x128xf32>,
    } else {
    }
    return
  }
  func.func @transform_0(%arg0: i32, %arg1: i32) -> (i32, i32) {
    %c0_i32 = arith.constant 0 : i32
    %c0_i32_0 = arith.constant 0 : i32
    return %arg0, %c0_i32 : i32, i32
  }
  func.func @transform_1(%arg0: i32, %arg1: i32) -> (i32, i32) {
    %c0_i32 = arith.constant 0 : i32
    %c0_i32_0 = arith.constant 0 : i32
    return %arg1, %c0_i32 : i32, i32
  }
  func.func @transform_2(%arg0: i32, %arg1: i32) -> (i32, i32) {
    %c0_i32 = arith.constant 0 : i32
    %c0_i32_0 = arith.constant 0 : i32
    return %arg0, %c0_i32 : i32, i32
  }
}

</mosaic_0001>

<llo_original>
// kernel: tpu_custom_call.1
$region0: #{tpu_custom_call.1}
  #allocation0 [shape = 'u32[]', space=smem, size = 0x4, offset = 0x4, fixed_abs, tag = 'smem constant byte address 0x4 - core index']
  #allocation1 [shape = 'u32[144,128]{1,0:T(1,128)}', space=vmem, size = 0x12000, scoped, tag = 'internal scratch']
  #allocation2 [shape = 'f32[8,1]{1,0:T(8,128)}', space=vmem, size = 0x1000, scoped, tag = 'scratch operand']
  #allocation3 [shape = 'f32[8,1]{1,0:T(8,128)}', space=vmem, size = 0x1000, scoped, tag = 'scratch operand']
  #allocation4 [shape = 'f32[8,1]{1,0:T(8,128)}', space=vmem, size = 0x1000, scoped, tag = 'scratch operand']
  %s0 = inlined_call_operand.hbm [shape: f32[8,32], index: 0, kind: input, shape index: {}]
  %s1 = inlined_call_operand.hbm [shape: f32[8,32], index: 1, kind: input, shape index: {}]
  %s2 = inlined_call_operand.hbm [shape: f32[8,128], index: 2, kind: output, shape index: {}]
  %s3 = sld [smem:[#allocation0]]
  $region38: #{tpu_custom_call.1} parent=0
    _
  %s5 = ssub.s32 1, %s3
  %s6 = scalar_select 0, %s5, %s3
  $region1: #{tpu_custom_call.1} parent=0
    #allocation5 [shape = 'u8[4096]{0}', space=vmem, size = 0x1000, scoped, tag = 'input window, operand 0, single buffered']
    #allocation6 [shape = 's32[1]{0}', space=sflag, size = 0x4, scoped, tag = 'scoped memory for tpu_custom_call.1']
    #allocation7 [shape = 's32[1]{0}', space=sflag, size = 0x4, scoped, tag = 'scoped memory for tpu_custom_call.1']
    #allocation8 [shape = 'u8[4096]{0}', space=vmem, size = 0x1000, scoped, tag = 'input window, operand 1, single buffered']
    #allocation9 [shape = 's32[1]{0}', space=sflag, size = 0x4, scoped, tag = 'scoped memory for tpu_custom_call.1']
    #allocation10 [shape = 'u8[4096]{0}', space=vmem, size = 0x1000, scoped, tag = 'output window, operand 0, single buffered']
    %7 = vsyncpa [#allocation6], 0
    %8 = vsyncpa [#allocation9], 0
    %9 = vsyncpa [#allocation7], 0
    // Predicated region
    $region2: #{tpu_custom_call.1} parent=1 // pred_check
      _
    $region3: #{tpu_custom_call.1} parent=1 // pred_check_branch
      %11 = sbr.rel (0) target = $region5
    $region4: #{tpu_custom_call.1} parent=1 // pred_region
      %s13 = ssub.s32 128, 128
      %14 = vsyncadd [#allocation6], %s13
      %s16 = sshll.u32 [#allocation5], 4
      %s17 = int_to_ptr.vmem [resolvable:$true] %s16
      %19 = dma.hbm_to_vmem [thread:$0]  %s0, 128, %s17, [#allocation6]
    $region5: #{tpu_custom_call.1} parent=1 // pred_fallthru
      _
    // Predicated region
    $region6: #{tpu_custom_call.1} parent=1 // pred_check
      _
    $region7: #{tpu_custom_call.1} parent=1 // pred_check_branch
      %21 = sbr.rel (0) target = $region9
    $region8: #{tpu_custom_call.1} parent=1 // pred_region
      %s23 = ssub.s32 128, 128
      %24 = vsyncadd [#allocation9], %s23
      %s26 = sshll.u32 [#allocation8], 4
      %s27 = int_to_ptr.vmem [resolvable:$true] %s26
      %29 = dma.hbm_to_vmem [thread:$0]  %s1, 128, %s27, [#allocation9]
    $region9: #{tpu_custom_call.1} parent=1 // pred_fallthru
      _
    // Predicated region
    $region10: #{tpu_custom_call.1} parent=1 // pred_check
      _
    $region11: #{tpu_custom_call.1} parent=1 // pred_check_branch
      %31 = sbr.rel (0) target = $region13
    $region12: #{tpu_custom_call.1} parent=1 // pred_region
      %32 = dma.done [#allocation6], 128
    $region13: #{tpu_custom_call.1} parent=1 // pred_fallthru
      _
    // Predicated region
    $region14: #{tpu_custom_call.1} parent=1 // pred_check
      _
    $region15: #{tpu_custom_call.1} parent=1 // pred_check_branch
      %34 = sbr.rel (0) target = $region17
    $region16: #{tpu_custom_call.1} parent=1 // pred_region
      %35 = dma.done [#allocation9], 128
    $region17: #{tpu_custom_call.1} parent=1 // pred_fallthru
      _
    %v36 = vld [vmem:[#allocation5] sm:$0xff]
    %v37 = vld [vmem:[#allocation8] sm:$0xff]
    %v38 = vmul.f32 %v36, %v36
    %vm39 = vcmask 261120
    %v40 = vsel %vm39, %v38, 0.0
    %41 = vadd.xlane.f32.xlu0 %v40
    %v42 = vpop.xlane.xlu0 %41
    %v43 = vmax.f32 %v42, 1e-16
    %v44 = vrsqrt.pop %v43
    %v45 = vmul.f32 %v37, %v37
    %v46 = vsel %vm39, %v45, 0.0
    %47 = vadd.xlane.f32.xlu0 %v46
    %v48 = vpop.xlane.xlu0 %47
    %v49 = vmax.f32 %v48, 1e-16
    %v50 = vrsqrt.pop %v49
    %v51 = vmul.f32 %v44, 20.0
    %v52 = vmul.f32 %v36, %v51
    %v53 = vmul.f32 %v37, %v50
    %v55 = vsel %vm39, %v52, 0
    %v58 = vsel %vm39, %v53, 0
    %60 = vmatprep.subr.mxu0 0.0
    %61 = vmatpush1.xpose.msra.mxu0 %v58
    %62 = vmatprep.subr.mxu0 0.0
    %63 = vmatpush1.xpose.msra.mxu0 0.0
    %64 = vmatprep.subr.mxu0 0.0
    %65 = vmatpush1.xpose.msra.mxu0 0.0
    %66 = vmatprep.subr.mxu0 0.0
    %67 = vmatpush1.xpose.msra.mxu0 0.0
    %68 = vmatprep.subr.mxu0 0.0
    %69 = vmatpush1.xpose.msra.mxu0 0.0
    %70 = vmatprep.subr.mxu0 0.0
    %71 = vmatpush1.xpose.msra.mxu0 0.0
    %72 = vmatprep.subr.mxu0 0.0
    %73 = vmatpush1.xpose.msra.mxu0 0.0
    %74 = vmatprep.subr.mxu0 0.0
    %75 = vmatpush1.xpose.msra.mxu0 0.0
    %76 = vmatprep.subr.mxu0 0.0
    %77 = vmatpush1.xpose.msra.mxu0 0.0
    %78 = vmatprep.subr.mxu0 0.0
    %79 = vmatpush1.xpose.msra.mxu0 0.0
    %80 = vmatprep.subr.mxu0 0.0
    %81 = vmatpush1.xpose.msra.mxu0 0.0
    %82 = vmatprep.subr.mxu0 0.0
    %83 = vmatpush1.xpose.msra.mxu0 0.0
    %84 = vmatprep.subr.mxu0 0.0
    %85 = vmatpush1.xpose.msra.mxu0 0.0
    %86 = vmatprep.subr.mxu0 0.0
    %87 = vmatpush1.xpose.msra.mxu0 0.0
    %88 = vmatprep.subr.mxu0 0.0
    %89 = vmatpush1.xpose.msra.mxu0 0.0
    %90 = vmatprep.subr.mxu0 0.0
    %91 = vmatpush1.xpose.msra.mxu0 0.0
    %92 = vmatprep.subr.mxu0 0.0
    %93 = vmatpush1.xpose.msra.mxu0 0.0
    %94 = vmatprep.subr.mxu0 0.0
    %95 = vmatpush1.xpose.msra.mxu0 0.0
    %96 = vmatprep.subr.mxu0 0.0
    %97 = vmatpush1.xpose.msra.mxu0 0.0
    %98 = vmatprep.subr.mxu0 0.0
    %99 = vmatpush1.xpose.msra.mxu0 0.0
    %100 = vmatprep.subr.mxu0 0.0
    %101 = vmatpush1.xpose.msra.mxu0 0.0
    %102 = vmatprep.subr.mxu0 0.0
    %103 = vmatpush1.xpose.msra.mxu0 0.0
    %104 = vmatprep.subr.mxu0 0.0
    %105 = vmatpush1.xpose.msra.mxu0 0.0
    %106 = vmatprep.subr.mxu0 0.0
    %107 = vmatpush1.xpose.msra.mxu0 0.0
    %108 = vmatprep.subr.mxu0 0.0
    %109 = vmatpush1.xpose.msra.mxu0 0.0
    %110 = vmatprep.subr.mxu0 0.0
    %111 = vmatpush1.xpose.msra.mxu0 0.0
    %112 = vmatprep.subr.mxu0 0.0
    %113 = vmatpush1.xpose.msra.mxu0 0.0
    %114 = vmatprep.subr.mxu0 0.0
    %115 = vmatpush1.xpose.msra.mxu0 0.0
    %116 = vmatprep.subr.mxu0 0.0
    %117 = vmatpush1.xpose.msra.mxu0 0.0
    %118 = vmatprep.subr.mxu0 0.0
    %119 = vmatpush1.xpose.msra.mxu0 0.0
    %120 = vmatprep.subr.mxu0 0.0
    %121 = vmatpush1.xpose.msra.mxu0 0.0
    %122 = vmatprep.subr.mxu0 0.0
    %123 = vmatpush1.xpose.msra.mxu0 0.0
    %124 = vmatprep.mubr.f32.mxu0 0.0
    %125 = vmatmul.mubr.f32.gmra.mrb[0].mxu0 %v55
    %v126 = vpop.f32.mrb[0].mxu0
    %v127 = vadd.f32 0.0, %v126
    %v128 = vpop.f32.mrb[0].mxu0
    %129 = vdwg.mxu0
    %v130 = vlaneseq
    %v131 = vshrl.u32 %v130, 7
    %v132 = vlaneseq
    %v133 = vand.u32 %v132, 127
    %p134 = scmp.eq.s32.totalorder 0, 0
    // Predicated region
    $region18: #{tpu_custom_call.1} parent=1 // pred_check
      %p135 = pneg %p134
    $region19: #{tpu_custom_call.1} parent=1 // pred_check_branch
      %137 = sbr.rel (%p135) target = $region21
    $region20: #{tpu_custom_call.1} parent=1 // pred_region
      %vm138 = vcmask 7168
      %139 = vst.msk [vmem:[#allocation2] sm:$0xff] %vm138, -1e+30
      %140 = vst.msk [vmem:[#allocation3] sm:$0xff] %vm138, 0.0
    $region21: #{tpu_custom_call.1} parent=1 // pred_fallthru
      _
    %p141 = scmp.eq.s32.totalorder 0, 0
    // Predicated region
    $region22: #{tpu_custom_call.1} parent=1 // pred_check
      %p142 = pneg %p141
    $region23: #{tpu_custom_call.1} parent=1 // pred_check_branch
      %144 = sbr.rel (%p142) target = $region25
    $region24: #{tpu_custom_call.1} parent=1 // pred_region
      %v145 = vxor.u32 %v131, 1
      %vm146 = vcmp.eq.s32.totalorder %v133, %v145
      %v147 = vsel %vm146, %v127, 0.0
      %vm148 = vcmask 64512
      %v149 = vsel %vm148, %v147, 0.0
      %150 = vadd.xlane.f32.xlu0 %v149
      %v151 = vpop.xlane.xlu0 %150
      %vm152 = vcmask 7168
      %153 = vst.msk [vmem:[#allocation4] sm:$0xff] %vm152, %v151
    $region25: #{tpu_custom_call.1} parent=1 // pred_fallthru
      _
    %v154 = vsub.s32 %v131, %v133
    %s155 = ssub.s32 0, 0
    %s156 = smul.u32 %s155, 8
    %v157 = vstv %s156
    %vm158 = vcmp.eq.s32.totalorder %v154, %v157
    %v159 = vsel %vm158, -1e+30, %v127
    %v160 = vld [vmem:[#allocation2] sm:$0xff]
    %vm161 = vcmask 64512
    %v162 = vsel %vm161, %v159, -inf
    %163 = vmax.xlane.f32.xlu0 %v162
    %v164 = vpop.xlane.xlu0 %163
    %v165 = vmax.f32 %v160, %v164
    %v166 = vsub.f32 %v160, %v165
    %v167 = vmul.f32 %v166, 1.442695
    %v168 = vpow.pop %v167
    %v169 = vld [vmem:[#allocation3] sm:$0xff]
    %v170 = vmul.f32 %v168, %v169
    %172 = vset.pattern.permute.xlu0 0
    %173 = vperm.xlu0 %172, %v165
    %v174 = vpop.permute.xlu0 %173
    %v176 = vsub.f32 %v159, %v174
    %v177 = vmul.f32 %v176, 1.442695
    %v178 = vpow.pop %v177
    %v179 = vsel %vm161, %v178, 0.0
    %180 = vadd.xlane.f32.xlu0 %v179
    %v181 = vpop.xlane.xlu0 %180
    %v182 = vadd.f32 %v170, %v181
    %vm183 = vcmask 7168
    %184 = vst.msk [vmem:[#allocation3] sm:$0xff] %vm183, %v182
    %185 = vst.msk [vmem:[#allocation2] sm:$0xff] %vm183, %v165
    // Predicated region
    $region26: #{tpu_custom_call.1} parent=1 // pred_check
      %p186 = pneg %p134
    $region27: #{tpu_custom_call.1} parent=1 // pred_check_branch
      %188 = sbr.rel (%p186) target = $region29
    $region28: #{tpu_custom_call.1} parent=1 // pred_region
      %v189 = vld [vmem:[#allocation2] sm:$0xff]
      %v190 = vld [vmem:[#allocation3] sm:$0xff]
      %v191 = vlog2.pop %v190
      %v192 = vmul.f32 %v191, 0.6931472
      %v193 = vadd.f32 %v189, %v192
      %v194 = vld [vmem:[#allocation4] sm:$0xff]
      %v195 = vsub.f32 %v193, %v194
      %197 = vset.pattern.permute.xlu0 0
      %198 = vperm.xlu0 %197, %v195
      %v199 = vpop.permute.xlu0 %198
      %201 = vst [vmem:[#allocation10] sm:$0xff] %v199
    $region29: #{tpu_custom_call.1} parent=1 // pred_fallthru
      _
    // Predicated region
    $region30: #{tpu_custom_call.1} parent=1 // pred_check
      _
    $region31: #{tpu_custom_call.1} parent=1 // pred_check_branch
      %203 = sbr.rel (0) target = $region33
    $region32: #{tpu_custom_call.1} parent=1 // pred_region
      %s205 = ssub.s32 128, 128
      %206 = vsyncadd [#allocation7], %s205
      %s208 = sshll.u32 [#allocation10], 4
      %s209 = int_to_ptr.vmem [resolvable:$true] %s208
      %211 = dma.vmem_to_hbm [thread:$0]  %s209, 128, %s2, [#allocation7]
    $region33: #{tpu_custom_call.1} parent=1 // pred_fallthru
      _
    // Predicated region
    $region34: #{tpu_custom_call.1} parent=1 // pred_check
      _
    $region35: #{tpu_custom_call.1} parent=1 // pred_check_branch
      %213 = sbr.rel (0) target = $region37
    $region36: #{tpu_custom_call.1} parent=1 // pred_region
      %214 = dma.done [#allocation7], 128
    $region37: #{tpu_custom_call.1} parent=1 // pred_fallthru
      _
    %215 = vsyncpa [#allocation6], 1
    %216 = vsyncpa [#allocation9], 1
    %217 = vsyncpa [#allocation7], 1

</llo_original>
